<compile_context>
chip_gen: v6e
topology: v6e:2x2x1
jax: 0.10.0
libtpu: 0.0.40
codegen_flags: <defaults>
</compile_context>

<pallas_src>
import math

import jax
import jax.numpy as jnp
from jax.experimental import pallas as pl
from jax.experimental.pallas import tpu as pltpu


def _round_up(x, m):
    return (x + m - 1) // m * m


def _linear_kernel(x_ref, w_ref, b_ref, o_ref):
    # x_ref: (tile_n, in_pad)   w_ref: (in_pad, tile_o)
    # b_ref: (1, tile_o)        o_ref: (tile_n, tile_o)
    acc = jnp.dot(x_ref[...], w_ref[...], preferred_element_type=jnp.float32)
    acc = acc + b_ref[...].astype(jnp.float32)
    o_ref[...] = acc.astype(o_ref.dtype)


def standard_linear(x, weight, bias=None, *, tile_n=256, tile_o=256, mm_dtype=None):
    """Pallas equivalent of Standard_Linear.forward.

    x:      [..., in_features]
    weight: [out_features, in_features]   (PyTorch nn.Linear layout)
    bias:   [out_features] or None
    mm_dtype: optional dtype (e.g. jnp.bfloat16) for the matmul operands;
              accumulation is always f32.
    """
    *lead, in_features = x.shape
    out_features = weight.shape[0]
    out_dtype = x.dtype

    x2 = x.reshape(-1, in_features)
    n = x2.shape[0]

    # Lane/sublane-aligned, lane-dense padded shapes.
    tile_o = min(tile_o, _round_up(out_features, 128))
    tile_n = min(tile_n, _round_up(n, 8))
    in_pad = _round_up(in_features, 128)
    out_pad = _round_up(out_features, tile_o)
    n_pad = _round_up(n, tile_n)

    # Pre-transpose W to [in, out]; zero-pad so padded lanes contribute 0.
    w_p = jnp.pad(weight.T, ((0, in_pad - in_features), (0, out_pad - out_features)))
    if bias is None:
        b_p = jnp.zeros((1, out_pad), jnp.float32)
    else:
        b_p = jnp.pad(bias.astype(jnp.float32).reshape(1, -1),
                      ((0, 0), (0, out_pad - out_features)))
    x_p = jnp.pad(x2, ((0, n_pad - n), (0, in_pad - in_features)))

    # Optional bf16 operands (halves DMA bytes; f32 accumulation in-kernel).
    if mm_dtype is not None:
        x_p = x_p.astype(mm_dtype)
        w_p = w_p.astype(mm_dtype)

    grid = (out_pad // tile_o, n_pad // tile_n)  # out-tiles outer, row-tiles inner

    cost = pl.CostEstimate(
        flops=2 * n_pad * in_pad * out_pad,
        transcendentals=0,
        bytes_accessed=(x_p.size * x_p.dtype.itemsize
                        + w_p.size * w_p.dtype.itemsize
                        + b_p.size * 4
                        + n_pad * out_pad * jnp.dtype(out_dtype).itemsize),
    )

    out_padded = pl.pallas_call(
        _linear_kernel,
        out_shape=jax.ShapeDtypeStruct((n_pad, out_pad), out_dtype),
        grid_spec=pltpu.PrefetchScalarGridSpec(
            num_scalar_prefetch=0,
            grid=grid,
            in_specs=[
                # x row-tile: changes with inner axis only.
                pl.BlockSpec((tile_n, in_pad), lambda j, i: (i, 0)),
                # W column-slab: depends only on outer axis -> stays resident
                # in VMEM across the inner row loop (no re-DMA per step).
                pl.BlockSpec((in_pad, tile_o), lambda j, i: (0, j)),
                # bias slab (tiny, same residency as W).
                pl.BlockSpec((1, tile_o), lambda j, i: (0, j)),
            ],
            out_specs=pl.BlockSpec((tile_n, tile_o), lambda j, i: (i, j)),
        ),
        compiler_params=pltpu.CompilerParams(
            dimension_semantics=("parallel", "parallel"),
            vmem_limit_bytes=48 * 1024 * 1024,
        ),
        cost_estimate=cost,
    )(x_p, w_p, b_p)

    y = out_padded[:n, :out_features]
    return y.reshape(*lead, out_features)


def init_standard_linear(key, in_features, out_features,
                         std_weights=1.0, std_bias=0.0, bias=True,
                         dtype=jnp.float32):
    """Mirrors Standard_Linear.reset_parameters:
    weight ~ N(0, std_weights/sqrt(in_features)), bias ~ N(0, std_bias)."""
    kw, kb = jax.random.split(key)
    w = (std_weights / math.sqrt(in_features)) * jax.random.normal(
        kw, (out_features, in_features), dtype)
    b = std_bias * jax.random.normal(kb, (out_features,), dtype) if bias else None
    return w, b


if __name__ == "__main__":
    in_features, out_features = 128, 256
    batch, seq = 2, 256  # 512 tokens -> two 256-row grid steps (feeds both v7x TCs)

    key = jax.random.PRNGKey(0)
    kx, kp = jax.random.split(key)
    x = jax.random.normal(kx, (batch, seq, in_features), jnp.float32)
    w, b = init_standard_linear(kp, in_features, out_features,
                                std_weights=1.0, std_bias=0.1)

    ref = jnp.einsum("bsi,oi->bso", x, w) + b

    # f32 path (matches the PyTorch/f32 reference closely).
    out = standard_linear(x, w, b)
    jax.block_until_ready(out)
    assert out.shape == ref.shape
    assert jnp.allclose(out, ref, atol=1e-4, rtol=1e-4)

    # bf16-operand path (f32 accumulation) -- looser tolerance by design.
    out_bf16 = standard_linear(x, w, b, mm_dtype=jnp.bfloat16)
    jax.block_until_ready(out_bf16)
    assert jnp.allclose(out_bf16, ref, atol=5e-2, rtol=5e-2)

    # bias=False path of the module.
    out_nb = standard_linear(x, w, None)
    jax.block_until_ready(out_nb)
    assert jnp.allclose(out_nb, jnp.einsum("bsi,oi->bso", x, w),
                        atol=1e-4, rtol=1e-4)

    print("KERNEL_OK")
</pallas_src>

<mosaic_0001>
module attributes {stable_mosaic.version = 11 : i64} {
  func.func @_linear_kernel(%arg0: i32, %arg1: i32, %arg2: memref<256x128xf32, #tpu.memory_space<vmem>>, %arg3: memref<128x256xf32, #tpu.memory_space<vmem>>, %arg4: memref<1x256xf32, #tpu.memory_space<vmem>>, %arg5: memref<256x256xf32, #tpu.memory_space<vmem>>) attributes {dimension_semantics = [#tpu.dimension_semantics<parallel>, #tpu.dimension_semantics<parallel>], iteration_bounds = array<i64: 1, 2>, scalar_prefetch = 0 : i64, scratch_operands = 0 : i64, tpu.core_type = #tpu.core_type<tc>, window_params = [{transform_indices = @transform_0, window_bounds = array<i64: 256, 128>}, {transform_indices = @transform_1, window_bounds = array<i64: 128, 256>}, {transform_indices = @transform_2, window_bounds = array<i64: 1, 256>}, {transform_indices = @transform_3, window_bounds = array<i64: 256, 256>}]} {
    %c0 = arith.constant 0 : index
    %c0_0 = arith.constant 0 : index
    %0 = vector.load %arg2[%c0, %c0_0] : memref<256x128xf32, #tpu.memory_space<vmem>>, vector<256x128xf32>
    %c0_1 = arith.constant 0 : index
    %c0_2 = arith.constant 0 : index
    %1 = vector.load %arg3[%c0_1, %c0_2] : memref<128x256xf32, #tpu.memory_space<vmem>>, vector<128x256xf32>
    %cst = arith.constant dense<0.000000e+00> : vector<256x256xf32>
    %2 = tpu.matmul %0, %1, %cst {dimension_numbers = #tpu.dot_dimension_numbers<[1], [0], [0], [1], [0, 0, 1, 1], [], []>} : vector<256x128xf32>, vector<128x256xf32>, vector<256x256xf32> -> vector<256x256xf32>
    %c0_3 = arith.constant 0 : index
    %c0_4 = arith.constant 0 : index
    %3 = vector.load %arg4[%c0_3, %c0_4] : memref<1x256xf32, #tpu.memory_space<vmem>>, vector<1x256xf32>
    %4 = vector.broadcast %3 : vector<1x256xf32> to vector<256x256xf32>
    %5 = arith.addf %2, %4 : vector<256x256xf32>
    %c0_5 = arith.constant 0 : index
    %c0_6 = arith.constant 0 : index
    %6 = vector.load %arg5[%c0_5, %c0_6] : memref<256x256xf32, #tpu.memory_space<vmem>>, vector<256x256xf32>
    tpu.vector_store %arg5[%c0_5, %c0_6], %5 {strides = array<i32>} : memref<256x256xf32, #tpu.memory_space<vmem>>, vector<256x256xf32>,
    return
  }
  func.func @transform_0(%arg0: i32, %arg1: i32) -> (i32, i32) {
    %c0_i32 = arith.constant 0 : i32
    %c0_i32_0 = arith.constant 0 : i32
    return %arg1, %c0_i32 : i32, i32
  }
  func.func @transform_1(%arg0: i32, %arg1: i32) -> (i32, i32) {
    %c0_i32 = arith.constant 0 : i32
    %c0_i32_0 = arith.constant 0 : i32
    return %c0_i32, %arg0 : i32, i32
  }
  func.func @transform_2(%arg0: i32, %arg1: i32) -> (i32, i32) {
    %c0_i32 = arith.constant 0 : i32
    %c0_i32_0 = arith.constant 0 : i32
    return %c0_i32, %arg0 : i32, i32
  }
  func.func @transform_3(%arg0: i32, %arg1: i32) -> (i32, i32) {
    %c0_i32 = arith.constant 0 : i32
    return %arg1, %arg0 : i32, i32
  }
}

</mosaic_0001>

<llo_original>
// kernel: tpu_custom_call.1
$region0: #{tpu_custom_call.1}
  #allocation0 [shape = 'u32[]', space=smem, size = 0x4, offset = 0x4, fixed_abs, tag = 'smem constant byte address 0x4 - core index']
  #allocation1 [shape = 'u32[144,128]{1,0:T(1,128)}', space=vmem, size = 0x12000, scoped, tag = 'internal scratch']
  %s0 = inlined_call_operand.hbm [shape: f32[512,128], index: 0, kind: input, shape index: {}]
  %s1 = inlined_call_operand.hbm [shape: f32[128,256], index: 1, kind: input, shape index: {}]
  %s2 = inlined_call_operand.vmem [shape: f32[1,256], index: 2, kind: input, shape index: {}]
  %s3 = inlined_call_operand.hbm [shape: f32[512,256], index: 3, kind: output, shape index: {}]
  %s4 = sld [smem:[#allocation0]]
  $region53: #{tpu_custom_call.1} parent=0
    _
  %s6 = ssub.s32 1, %s4
  %s7 = scalar_select 0, %s6, %s4
  $region1: #{tpu_custom_call.1} parent=0
    #allocation2 [shape = 'u8[262144]{0}', space=vmem, size = 0x40000, scoped, tag = 'input window, operand 0']
    #allocation3 [shape = 's32[2]{0}', space=sflag, size = 0x8, scoped, tag = 'scoped memory for tpu_custom_call.1']
    #allocation4 [shape = 's32[2]{0}', space=sflag, size = 0x8, scoped, tag = 'scoped memory for tpu_custom_call.1']
    #allocation5 [shape = 'u8[131072]{0}', space=vmem, size = 0x20000, scoped, tag = 'input window, operand 1, single buffered']
    #allocation6 [shape = 's32[1]{0}', space=sflag, size = 0x4, scoped, tag = 'scoped memory for tpu_custom_call.1']
    #allocation7 [shape = 'u8[524288]{0}', space=vmem, size = 0x80000, scoped, tag = 'output window, operand 0']
    %8 = vsyncpa [#allocation3], 0
    %s9 = scalar_lea.sflag [#allocation3], 1
    %10 = vsyncpa %s9, 0
    %11 = vsyncpa [#allocation6], 0
    %12 = vsyncpa [#allocation4], 0
    %s13 = scalar_lea.sflag [#allocation4], 1
    %14 = vsyncpa %s13, 0
    loop: start=0, step=1, limit=4
    $region2: #{tpu_custom_call.1} parent=1 // loop_pre_header
      _
    $region3: #{tpu_custom_call.1} parent=1 // loop_header
      %s16 = sphi 0, %s20
      %p17 = scmp.ge.s32.totalorder %s16, 4
      %s23 = sphi 0, %s35
      %s24 = sphi 0, %s31
      %s25 = sphi 0, %s23
      %s26 = sphi 0, %s24
      %s27 = sphi 0, %s25
      %s28 = sphi 0, %s26
      %s38 = sphi 0, %s40
      %s41 = sphi 0, %s38
      %s42 = sphi 0, %s41
      %s58 = sphi 0, %s42
      %s64 = sphi 0, %s66
      %s67 = sphi 0, %s64
      %s68 = sphi 0, %s67
      %s84 = sphi 0, %s68
      %s90 = sphi 0, %s92
      %s93 = sphi 0, %s90
      %s94 = sphi 0, %s93
      %s110 = sphi 0, %s94
      %s118 = sphi 0, %s120
      %s121 = sphi 0, %s118
      %s122 = sphi 0, %s121
      %s138 = sphi 0, %s122
    $region4: #{tpu_custom_call.1} parent=1 // loop_header_branch
      %19 = sbr.rel (%p17) target = $region8
    $region5: #{tpu_custom_call.1} parent=1 // loop_body
      %s21 = ssub.s32 %s16, 1
      %s22 = ssub.s32 %s16, 2
      %s29 = sadd.s32 1, %s24
      %p30 = scmp.ge.s32.totalorder %s29, 2
      %s31 = scalar_select %p30, 0, %s29
      %s32 = sadd.s32 1, %s23
      %s33 = scalar_select %p30, %s32, %s23
      %p34 = scmp.ge.s32.totalorder %s33, 1
      %s35 = scalar_select %p34, 0, %s33
      %s36 = ssub.s32 %s24, %s31
      %p37 = scmp.eq.s32.totalorder %s36, 0
      %s39 = sadd.s32 %s38, 1
      %s40 = scalar_select %p37, %s38, %s39
      %p43 = pneg %p37
      %p44 = scmp.eq.s32.totalorder %s16, 1
      %p45 = por %p43, %p44
      %p46 = scmp.ne.s32.totalorder %s38, %s41
      %p47 = scmp.eq.s32.totalorder %s16, 0
      %p48 = por %p46, %p47
      %p49 = scmp.ne.s32.totalorder %s38, %s41
      %p50 = scmp.eq.s32.totalorder %s21, 1
      %p51 = por %p49, %p50
      %p52 = scmp.ne.s32.totalorder %s41, %s42
      %p53 = scmp.eq.s32.totalorder %s21, 0
      %p54 = por %p52, %p53
      %p55 = scmp.ne.s32.totalorder %s41, %s42
      %p56 = scmp.eq.s32.totalorder %s22, 1
      %p57 = por %p55, %p56
      %p59 = scmp.ne.s32.totalorder %s42, %s58
      %p60 = scmp.eq.s32.totalorder %s22, 0
      %p61 = por %p59, %p60
      %s62 = ssub.s32 %s23, %s35
      %p63 = scmp.eq.s32.totalorder %s62, 0
      %s65 = sadd.s32 %s64, 1
      %s66 = scalar_select %p63, %s64, %s65
      %p69 = pneg %p63
      %p70 = scmp.eq.s32.totalorder %s16, 1
      %p71 = por %p69, %p70
      %p72 = scmp.ne.s32.totalorder %s64, %s67
      %p73 = scmp.eq.s32.totalorder %s16, 0
      %p74 = por %p72, %p73
      %p75 = scmp.ne.s32.totalorder %s64, %s67
      %p76 = scmp.eq.s32.totalorder %s21, 1
      %p77 = por %p75, %p76
      %p78 = scmp.ne.s32.totalorder %s67, %s68
      %p79 = scmp.eq.s32.totalorder %s21, 0
      %p80 = por %p78, %p79
      %p81 = scmp.ne.s32.totalorder %s67, %s68
      %p82 = scmp.eq.s32.totalorder %s22, 1
      %p83 = por %p81, %p82
      %p85 = scmp.ne.s32.totalorder %s68, %s84
      %p86 = scmp.eq.s32.totalorder %s22, 0
      %p87 = por %p85, %p86
      %s88 = ssub.s32 %s23, %s35
      %p89 = scmp.eq.s32.totalorder %s88, 0
      %s91 = sadd.s32 %s90, 1
      %s92 = scalar_select %p89, %s90, %s91
      %p95 = pneg %p89
      %p96 = scmp.eq.s32.totalorder %s16, 1
      %p97 = por %p95, %p96
      %p98 = scmp.ne.s32.totalorder %s90, %s93
      %p99 = scmp.eq.s32.totalorder %s16, 0
      %p100 = por %p98, %p99
      %p101 = scmp.ne.s32.totalorder %s90, %s93
      %p102 = scmp.eq.s32.totalorder %s21, 1
      %p103 = por %p101, %p102
      %p104 = scmp.ne.s32.totalorder %s93, %s94
      %p105 = scmp.eq.s32.totalorder %s21, 0
      %p106 = por %p104, %p105
      %p107 = scmp.ne.s32.totalorder %s93, %s94
      %p108 = scmp.eq.s32.totalorder %s22, 1
      %p109 = por %p107, %p108
      %p111 = scmp.ne.s32.totalorder %s94, %s110
      %p112 = scmp.eq.s32.totalorder %s22, 0
      %p113 = por %p111, %p112
      %s114 = ssub.s32 %s24, %s31
      %s115 = ssub.s32 %s23, %s35
      %s116 = sor.u32 %s114, %s115
      %p117 = scmp.eq.s32.totalorder %s116, 0
      %s119 = sadd.s32 %s118, 1
      %s120 = scalar_select %p117, %s118, %s119
      %p123 = pneg %p117
      %p124 = scmp.eq.s32.totalorder %s16, 1
      %p125 = por %p123, %p124
      %p126 = scmp.ne.s32.totalorder %s118, %s121
      %p127 = scmp.eq.s32.totalorder %s16, 0
      %p128 = por %p126, %p127
      %p129 = scmp.ne.s32.totalorder %s118, %s121
      %p130 = scmp.eq.s32.totalorder %s21, 1
      %p131 = por %p129, %p130
      %p132 = scmp.ne.s32.totalorder %s121, %s122
      %p133 = scmp.eq.s32.totalorder %s21, 0
      %p134 = por %p132, %p133
      %p135 = scmp.ne.s32.totalorder %s121, %s122
      %p136 = scmp.eq.s32.totalorder %s22, 1
      %p137 = por %p135, %p136
      %p139 = scmp.ne.s32.totalorder %s122, %s138
      %p140 = scmp.eq.s32.totalorder %s22, 0
      %p141 = por %p139, %p140
      %p142 = scmp.le.s32.totalorder 1, %s16
      %p143 = scmp.lt.s32.totalorder %s16, 3
      %p144 = pnand %p142, %p143
      %p145 = pneg %p144
      // Predicated region
      $region9: #{tpu_custom_call.1} parent=5 // pred_check
        _
      $region10: #{tpu_custom_call.1} parent=5 // pred_check_branch
        %147 = sbr.rel (%p144) target = $region12
      $region11: #{tpu_custom_call.1} parent=5 // pred_region
        %s148 = ssub.s32 %s16, 1
        // Predicated region
        $region13: #{tpu_custom_call.1} parent=11 // pred_check
          %p149 = pneg %p80
        $region14: #{tpu_custom_call.1} parent=11 // pred_check_branch
          %151 = sbr.rel (%p149) target = $region16
        $region15: #{tpu_custom_call.1} parent=11 // pred_region
          %s152 = smul.u32 2, %s25
          %s154 = ssub.s32 4096, 4096
          %155 = vsyncadd [#allocation6], %s154
          %s156 = smul.addr %s152, 128
          %s157 = scalar_lea.hbm %s1, %s156
          %s158 = sshll.u32 [#allocation5], 4
          %s159 = int_to_ptr.vmem [resolvable:$true] %s158
          %164 = dma.hbm_to_vmem [thread:$0]  %s157, 4096, %s159, [#allocation6], 256, 256, 16
        $region16: #{tpu_custom_call.1} parent=11 // pred_fallthru
          _
        // Predicated region
        $region17: #{tpu_custom_call.1} parent=11 // pred_check
          %p165 = pneg %p106
        $region18: #{tpu_custom_call.1} parent=11 // pred_check_branch
          %167 = sbr.rel (%p165) target = $region20
        $region19: #{tpu_custom_call.1} parent=11 // pred_region
          %s168 = smul.u32 2, %s25
          %p169 = scmp.lt.s32.totalorder %s168, 1
          %s170 = scalar_select %p169, %s168, 1
          %s171 = scalar_lea.vmem %s2, %s170
          %s172 = smul.u32 2, %s25
        $region20: #{tpu_custom_call.1} parent=11 // pred_fallthru
          _
      $region12: #{tpu_custom_call.1} parent=5 // pred_fallthru
        _
      %p173 = scmp.lt.s32.totalorder %s16, 2
      // Predicated region
      $region21: #{tpu_custom_call.1} parent=5 // pred_check
        %p174 = pneg %p173
      $region22: #{tpu_custom_call.1} parent=5 // pred_check_branch
        %176 = sbr.rel (%p174) target = $region24
      $region23: #{tpu_custom_call.1} parent=5 // pred_region
        // Predicated region
        $region25: #{tpu_custom_call.1} parent=23 // pred_check
          %p177 = pneg %p48
        $region26: #{tpu_custom_call.1} parent=23 // pred_check_branch
          %179 = sbr.rel (%p177) target = $region28
        $region27: #{tpu_custom_call.1} parent=23 // pred_region
          %s180 = sand.u32 %s38, 1
          %s181 = scalar_lea.sflag [#allocation3], %s180
          %s182 = sand.u32 %s38, 1
          %s183 = smul.addr %s182, 256
          %s184 = scalar_lea.vmem [#allocation2], %s183
          %s185 = smul.u32 32, %s24
          %s187 = ssub.s32 4096, 4096
          %188 = vsyncadd %s181, %s187
          %s189 = smul.addr %s185, 128
          %s190 = scalar_lea.hbm %s0, %s189
          %s191 = sshll.u32 %s184, 4
          %s192 = int_to_ptr.vmem [resolvable:$true] %s191
          %197 = dma.hbm_to_vmem [thread:$0]  %s190, 4096, %s192, %s181, 128, 128, 8
        $region28: #{tpu_custom_call.1} parent=23 // pred_fallthru
          _
      $region24: #{tpu_custom_call.1} parent=5 // pred_fallthru
        _
      %p198 = scmp.le.s32.totalorder 1, %s16
      %p199 = scmp.lt.s32.totalorder %s16, 3
      %p200 = pnand %p198, %p199
      %p201 = pneg %p200
      // Predicated region
      $region29: #{tpu_custom_call.1} parent=5 // pred_check
        _
      $region30: #{tpu_custom_call.1} parent=5 // pred_check_branch
        %203 = sbr.rel (%p200) target = $region32
      $region31: #{tpu_custom_call.1} parent=5 // pred_region
        %s204 = ssub.s32 %s16, 1
        %s205 = sand.u32 %s41, 1
        %s206 = scalar_lea.sflag [#allocation3], %s205
        %s207 = sand.u32 %s41, 1
        %s208 = smul.addr %s207, 256
        %s209 = scalar_lea.vmem [#allocation2], %s208
        // Predicated region
        $region33: #{tpu_custom_call.1} parent=31 // pred_check
          %p210 = pneg %p54
        $region34: #{tpu_custom_call.1} parent=31 // pred_check_branch
          %212 = sbr.rel (%p210) target = $region36
        $region35: #{tpu_custom_call.1} parent=31 // pred_region
          %213 = dma.done %s206, 4096
        $region36: #{tpu_custom_call.1} parent=31 // pred_fallthru
          _
        // Predicated region
        $region37: #{tpu_custom_call.1} parent=31 // pred_check
          %p214 = pneg %p80
        $region38: #{tpu_custom_call.1} parent=31 // pred_check_branch
          %216 = sbr.rel (%p214) target = $region40
        $region39: #{tpu_custom_call.1} parent=31 // pred_region
          %217 = dma.done [#allocation6], 4096
        $region40: #{tpu_custom_call.1} parent=31 // pred_fallthru
          _
        %s218 = sand.u32 %s41, 1
        %s219 = scalar_lea.sflag [#allocation3], %s218
        %s220 = sand.u32 %s41, 1
        %s221 = smul.addr %s220, 256
        %s222 = scalar_lea.vmem [#allocation2], %s221
        %p223 = pneg %p54
        %p224 = pneg %p51
        %p225 = pneg %p80
        %p226 = pneg %p77
        %s227 = smul.u32 2, %s25
        %p228 = scmp.lt.s32.totalorder %s227, 1
        %s229 = scalar_select %p228, %s227, 1
        %s230 = scalar_lea.vmem %s2, %s229
        %p231 = pneg %p106
        %p232 = pneg %p103
        %p233 = pneg %p134
        %p234 = pneg %p131
        %s235 = sand.u32 %s121, 1
        %s236 = scalar_lea.sflag [#allocation4], %s235
        %s237 = sand.u32 %s121, 1
        %s238 = smul.addr %s237, 512
        %s239 = scalar_lea.vmem [#allocation7], %s238
        %s240 = smul.u32 32, %s26
        %s241 = smul.u32 2, %s25
        %s242 = smul.u32 2, %s25
        %p243 = scmp.lt.s32.totalorder %s242, 1
        %s244 = scalar_select %p243, %s242, 1
        %s245 = scalar_lea.vmem %s2, %s244
        %s246 = smul.u32 2, %s25
        %s247 = smul.u32 32, %s26
        %s248 = smul.u32 2, %s25
        %v249 = vld [vmem:[%s209] sm:$0xff]
        %v250 = vld [vmem:[%s209 + $0x8] sm:$0xff]
        %v251 = vld [vmem:[%s209 + $0x10] sm:$0xff]
        %v252 = vld [vmem:[%s209 + $0x18] sm:$0xff]
        %v253 = vld [vmem:[%s209 + $0x20] sm:$0xff]
        %v254 = vld [vmem:[%s209 + $0x28] sm:$0xff]
        %v255 = vld [vmem:[%s209 + $0x30] sm:$0xff]
        %v256 = vld [vmem:[%s209 + $0x38] sm:$0xff]
        %v257 = vld [vmem:[%s209 + $0x40] sm:$0xff]
        %v258 = vld [vmem:[%s209 + $0x48] sm:$0xff]
        %v259 = vld [vmem:[%s209 + $0x50] sm:$0xff]
        %v260 = vld [vmem:[%s209 + $0x58] sm:$0xff]
        %v261 = vld [vmem:[%s209 + $0x60] sm:$0xff]
        %v262 = vld [vmem:[%s209 + $0x68] sm:$0xff]
        %v263 = vld [vmem:[%s209 + $0x70] sm:$0xff]
        %v264 = vld [vmem:[%s209 + $0x78] sm:$0xff]
        %v265 = vld [vmem:[%s209 + $0x80] sm:$0xff]
        %v266 = vld [vmem:[%s209 + $0x88] sm:$0xff]
        %v267 = vld [vmem:[%s209 + $0x90] sm:$0xff]
        %v268 = vld [vmem:[%s209 + $0x98] sm:$0xff]
        %v269 = vld [vmem:[%s209 + $0xa0] sm:$0xff]
        %v270 = vld [vmem:[%s209 + $0xa8] sm:$0xff]
        %v271 = vld [vmem:[%s209 + $0xb0] sm:$0xff]
        %v272 = vld [vmem:[%s209 + $0xb8] sm:$0xff]
        %v273 = vld [vmem:[%s209 + $0xc0] sm:$0xff]
        %v274 = vld [vmem:[%s209 + $0xc8] sm:$0xff]
        %v275 = vld [vmem:[%s209 + $0xd0] sm:$0xff]
        %v276 = vld [vmem:[%s209 + $0xd8] sm:$0xff]
        %v277 = vld [vmem:[%s209 + $0xe0] sm:$0xff]
        %v278 = vld [vmem:[%s209 + $0xe8] sm:$0xff]
        %v279 = vld [vmem:[%s209 + $0xf0] sm:$0xff]
        %v280 = vld [vmem:[%s209 + $0xf8] sm:$0xff]
        %v281 = vld [vmem:[#allocation5] sm:$0xff]
        %v282 = vld [vmem:[#allocation5 + $0x8] sm:$0xff]
        %v283 = vld [vmem:[#allocation5 + $0x10] sm:$0xff]
        %v284 = vld [vmem:[#allocation5 + $0x18] sm:$0xff]
        %v285 = vld [vmem:[#allocation5 + $0x20] sm:$0xff]
        %v286 = vld [vmem:[#allocation5 + $0x28] sm:$0xff]
        %v287 = vld [vmem:[#allocation5 + $0x30] sm:$0xff]
        %v288 = vld [vmem:[#allocation5 + $0x38] sm:$0xff]
        %v289 = vld [vmem:[#allocation5 + $0x40] sm:$0xff]
        %v290 = vld [vmem:[#allocation5 + $0x48] sm:$0xff]
        %v291 = vld [vmem:[#allocation5 + $0x50] sm:$0xff]
        %v292 = vld [vmem:[#allocation5 + $0x58] sm:$0xff]
        %v293 = vld [vmem:[#allocation5 + $0x60] sm:$0xff]
        %v294 = vld [vmem:[#allocation5 + $0x68] sm:$0xff]
        %v295 = vld [vmem:[#allocation5 + $0x70] sm:$0xff]
        %v296 = vld [vmem:[#allocation5 + $0x78] sm:$0xff]
        %v297 = vld [vmem:[#allocation5 + $0x80] sm:$0xff]
        %v298 = vld [vmem:[#allocation5 + $0x88] sm:$0xff]
        %v299 = vld [vmem:[#allocation5 + $0x90] sm:$0xff]
        %v300 = vld [vmem:[#allocation5 + $0x98] sm:$0xff]
        %v301 = vld [vmem:[#allocation5 + $0xa0] sm:$0xff]
        %v302 = vld [vmem:[#allocation5 + $0xa8] sm:$0xff]
        %v303 = vld [vmem:[#allocation5 + $0xb0] sm:$0xff]
        %v304 = vld [vmem:[#allocation5 + $0xb8] sm:$0xff]
        %v305 = vld [vmem:[#allocation5 + $0xc0] sm:$0xff]
        %v306 = vld [vmem:[#allocation5 + $0xc8] sm:$0xff]
        %v307 = vld [vmem:[#allocation5 + $0xd0] sm:$0xff]
        %v308 = vld [vmem:[#allocation5 + $0xd8] sm:$0xff]
        %v309 = vld [vmem:[#allocation5 + $0xe0] sm:$0xff]
        %v310 = vld [vmem:[#allocation5 + $0xe8] sm:$0xff]
        %v311 = vld [vmem:[#allocation5 + $0xf0] sm:$0xff]
        %v312 = vld [vmem:[#allocation5 + $0xf8] sm:$0xff]
        %v313 = vld [vmem:[%s245] sm:$0x3]
        %v315 = vlaneseq
        %v316 = vshrl.u32 %v315, 7
        %v317 = vsub.s32 0, %v316
        %v318 = vrot.slane %v313, %v317
        %v319 = vlaneseq
        %v320 = vshrl.u32 %v319, 7
        %v321 = vsub.s32 1, %v320
        %v322 = vrot.slane %v313, %v321
        %325 = vmatprep.subr.mxu0 %v312
        %326 = vmatpush1.msra.mxu0 %v311
        %327 = vmatprep.subr.mxu0 %v310
        %328 = vmatpush1.msra.mxu0 %v309
        %329 = vmatprep.subr.mxu0 %v308
        %330 = vmatpush1.msra.mxu0 %v307
        %331 = vmatprep.subr.mxu0 %v306
        %332 = vmatpush1.msra.mxu0 %v305
        %333 = vmatprep.subr.mxu0 %v304
        %334 = vmatpush1.msra.mxu0 %v303
        %335 = vmatprep.subr.mxu0 %v302
        %336 = vmatpush1.msra.mxu0 %v301
        %337 = vmatprep.subr.mxu0 %v300
        %338 = vmatpush1.msra.mxu0 %v299
        %339 = vmatprep.subr.mxu0 %v298
        %340 = vmatpush1.msra.mxu0 %v297
        %341 = vmatprep.subr.mxu0 %v296
        %342 = vmatpush1.msra.mxu0 %v295
        %343 = vmatprep.subr.mxu0 %v294
        %344 = vmatpush1.msra.mxu0 %v293
        %345 = vmatprep.subr.mxu0 %v292
        %346 = vmatpush1.msra.mxu0 %v291
        %347 = vmatprep.subr.mxu0 %v290
        %348 = vmatpush1.msra.mxu0 %v289
        %349 = vmatprep.subr.mxu0 %v288
        %350 = vmatpush1.msra.mxu0 %v287
        %351 = vmatprep.subr.mxu0 %v286
        %352 = vmatpush1.msra.mxu0 %v285
        %353 = vmatprep.subr.mxu0 %v284
        %354 = vmatpush1.msra.mxu0 %v283
        %355 = vmatprep.subr.mxu0 %v282
        %356 = vmatpush1.msra.mxu0 %v281
        %357 = vmatprep.subr.mxu0 0.0
        %358 = vmatpush2.msra.mxu0 0.0
        %359 = vmatprep.subr.mxu0 0.0
        %360 = vmatpush2.msra.mxu0 0.0
        %361 = vmatprep.subr.mxu0 0.0
        %362 = vmatpush2.msra.mxu0 0.0
        %363 = vmatprep.subr.mxu0 0.0
        %364 = vmatpush2.msra.mxu0 0.0
        %365 = vmatprep.subr.mxu0 0.0
        %366 = vmatpush2.msra.mxu0 0.0
        %367 = vmatprep.subr.mxu0 0.0
        %368 = vmatpush2.msra.mxu0 0.0
        %369 = vmatprep.subr.mxu0 0.0
        %370 = vmatpush2.msra.mxu0 0.0
        %371 = vmatprep.subr.mxu0 0.0
        %372 = vmatpush2.msra.mxu0 0.0
        %373 = vmatprep.subr.mxu0 0.0
        %374 = vmatpush2.msra.mxu0 0.0
        %375 = vmatprep.subr.mxu0 0.0
        %376 = vmatpush2.msra.mxu0 0.0
        %377 = vmatprep.subr.mxu0 0.0
        %378 = vmatpush2.msra.mxu0 0.0
        %379 = vmatprep.subr.mxu0 0.0
        %380 = vmatpush2.msra.mxu0 0.0
        %381 = vmatprep.subr.mxu0 0.0
        %382 = vmatpush2.msra.mxu0 0.0
        %383 = vmatprep.subr.mxu0 0.0
        %384 = vmatpush2.msra.mxu0 0.0
        %385 = vmatprep.subr.mxu0 0.0
        %386 = vmatpush2.msra.mxu0 0.0
        %387 = vmatprep.subr.mxu0 0.0
        %388 = vmatpush2.msra.mxu0 0.0
        %389 = vmatprep.mubr.f32.mxu0 0.0
        %390 = vmatmul.mubr.f32.gmra.mxu0 %v249
        %v391 = vpop.f32.mrf.mxu0
        %v392 = vadd.f32 %v318, %v391
        %v393 = vpop.f32.mrf.mxu0
        %v394 = vadd.f32 %v322, %v393
        %395 = vmatprep.mubr.f32.mxu0 0.0
        %396 = vmatmul.mubr.f32.gmra.mxu0 %v250
        %v397 = vpop.f32.mrf.mxu0
        %v398 = vadd.f32 %v318, %v397
        %v399 = vpop.f32.mrf.mxu0
        %v400 = vadd.f32 %v322, %v399
        %401 = vmatprep.mubr.f32.mxu0 0.0
        %402 = vmatmul.mubr.f32.gmra.mxu0 %v251
        %v403 = vpop.f32.mrf.mxu0
        %v404 = vadd.f32 %v318, %v403
        %v405 = vpop.f32.mrf.mxu0
        %v406 = vadd.f32 %v322, %v405
        %407 = vmatprep.mubr.f32.mxu0 0.0
        %408 = vmatmul.mubr.f32.gmra.mxu0 %v252
        %v409 = vpop.f32.mrf.mxu0
        %v410 = vadd.f32 %v318, %v409
        %v411 = vpop.f32.mrf.mxu0
        %v412 = vadd.f32 %v322, %v411
        %413 = vmatprep.mubr.f32.mxu0 0.0
        %414 = vmatmul.mubr.f32.gmra.mxu0 %v253
        %v415 = vpop.f32.mrf.mxu0
        %v416 = vadd.f32 %v318, %v415
        %v417 = vpop.f32.mrf.mxu0
        %v418 = vadd.f32 %v322, %v417
        %419 = vmatprep.mubr.f32.mxu0 0.0
        %420 = vmatmul.mubr.f32.gmra.mxu0 %v254
        %v421 = vpop.f32.mrf.mxu0
        %v422 = vadd.f32 %v318, %v421
        %v423 = vpop.f32.mrf.mxu0
        %v424 = vadd.f32 %v322, %v423
        %425 = vmatprep.mubr.f32.mxu0 0.0
        %426 = vmatmul.mubr.f32.gmra.mxu0 %v255
        %v427 = vpop.f32.mrf.mxu0
        %v428 = vadd.f32 %v318, %v427
        %v429 = vpop.f32.mrf.mxu0
        %v430 = vadd.f32 %v322, %v429
        %431 = vmatprep.mubr.f32.mxu0 0.0
        %432 = vmatmul.mubr.f32.gmra.mxu0 %v256
        %v433 = vpop.f32.mrf.mxu0
        %v434 = vadd.f32 %v318, %v433
        %v435 = vpop.f32.mrf.mxu0
        %v436 = vadd.f32 %v322, %v435
        %437 = vmatprep.mubr.f32.mxu0 0.0
        %438 = vmatmul.mubr.f32.gmra.mxu0 %v257
        %v439 = vpop.f32.mrf.mxu0
        %v440 = vadd.f32 %v318, %v439
        %v441 = vpop.f32.mrf.mxu0
        %v442 = vadd.f32 %v322, %v441
        %443 = vmatprep.mubr.f32.mxu0 0.0
        %444 = vmatmul.mubr.f32.gmra.mxu0 %v258
        %v445 = vpop.f32.mrf.mxu0
        %v446 = vadd.f32 %v318, %v445
        %v447 = vpop.f32.mrf.mxu0
        %v448 = vadd.f32 %v322, %v447
        %449 = vmatprep.mubr.f32.mxu0 0.0
        %450 = vmatmul.mubr.f32.gmra.mxu0 %v259
        %v451 = vpop.f32.mrf.mxu0
        %v452 = vadd.f32 %v318, %v451
        %v453 = vpop.f32.mrf.mxu0
        %v454 = vadd.f32 %v322, %v453
        %455 = vmatprep.mubr.f32.mxu0 0.0
        %456 = vmatmul.mubr.f32.gmra.mxu0 %v260
        %v457 = vpop.f32.mrf.mxu0
        %v458 = vadd.f32 %v318, %v457
        %v459 = vpop.f32.mrf.mxu0
        %v460 = vadd.f32 %v322, %v459
        %461 = vmatprep.mubr.f32.mxu0 0.0
        %462 = vmatmul.mubr.f32.gmra.mxu0 %v261
        %v463 = vpop.f32.mrf.mxu0
        %v464 = vadd.f32 %v318, %v463
        %v465 = vpop.f32.mrf.mxu0
        %v466 = vadd.f32 %v322, %v465
        %467 = vmatprep.mubr.f32.mxu0 0.0
        %468 = vmatmul.mubr.f32.gmra.mxu0 %v262
        %v469 = vpop.f32.mrf.mxu0
        %v470 = vadd.f32 %v318, %v469
        %v471 = vpop.f32.mrf.mxu0
        %v472 = vadd.f32 %v322, %v471
        %473 = vmatprep.mubr.f32.mxu0 0.0
        %474 = vmatmul.mubr.f32.gmra.mxu0 %v263
        %v475 = vpop.f32.mrf.mxu0
        %v476 = vadd.f32 %v318, %v475
        %v477 = vpop.f32.mrf.mxu0
        %v478 = vadd.f32 %v322, %v477
        %479 = vmatprep.mubr.f32.mxu0 0.0
        %480 = vmatmul.mubr.f32.gmra.mxu0 %v264
        %v481 = vpop.f32.mrf.mxu0
        %v482 = vadd.f32 %v318, %v481
        %v483 = vpop.f32.mrf.mxu0
        %v484 = vadd.f32 %v322, %v483
        %485 = vmatprep.mubr.f32.mxu0 0.0
        %486 = vmatmul.mubr.f32.gmra.mxu0 %v265
        %v487 = vpop.f32.mrf.mxu0
        %v488 = vadd.f32 %v318, %v487
        %v489 = vpop.f32.mrf.mxu0
        %v490 = vadd.f32 %v322, %v489
        %491 = vmatprep.mubr.f32.mxu0 0.0
        %492 = vmatmul.mubr.f32.gmra.mxu0 %v266
        %v493 = vpop.f32.mrf.mxu0
        %v494 = vadd.f32 %v318, %v493
        %v495 = vpop.f32.mrf.mxu0
        %v496 = vadd.f32 %v322, %v495
        %497 = vmatprep.mubr.f32.mxu0 0.0
        %498 = vmatmul.mubr.f32.gmra.mxu0 %v267
        %v499 = vpop.f32.mrf.mxu0
        %v500 = vadd.f32 %v318, %v499
        %v501 = vpop.f32.mrf.mxu0
        %v502 = vadd.f32 %v322, %v501
        %503 = vmatprep.mubr.f32.mxu0 0.0
        %504 = vmatmul.mubr.f32.gmra.mxu0 %v268
        %v505 = vpop.f32.mrf.mxu0
        %v506 = vadd.f32 %v318, %v505
        %v507 = vpop.f32.mrf.mxu0
        %v508 = vadd.f32 %v322, %v507
        %509 = vmatprep.mubr.f32.mxu0 0.0
        %510 = vmatmul.mubr.f32.gmra.mxu0 %v269
        %v511 = vpop.f32.mrf.mxu0
        %v512 = vadd.f32 %v318, %v511
        %v513 = vpop.f32.mrf.mxu0
        %v514 = vadd.f32 %v322, %v513
        %515 = vmatprep.mubr.f32.mxu0 0.0
        %516 = vmatmul.mubr.f32.gmra.mxu0 %v270
        %v517 = vpop.f32.mrf.mxu0
        %v518 = vadd.f32 %v318, %v517
        %v519 = vpop.f32.mrf.mxu0
        %v520 = vadd.f32 %v322, %v519
        %521 = vmatprep.mubr.f32.mxu0 0.0
        %522 = vmatmul.mubr.f32.gmra.mxu0 %v271
        %v523 = vpop.f32.mrf.mxu0
        %v524 = vadd.f32 %v318, %v523
        %v525 = vpop.f32.mrf.mxu0
        %v526 = vadd.f32 %v322, %v525
        %527 = vmatprep.mubr.f32.mxu0 0.0
        %528 = vmatmul.mubr.f32.gmra.mxu0 %v272
        %v529 = vpop.f32.mrf.mxu0
        %v530 = vadd.f32 %v318, %v529
        %v531 = vpop.f32.mrf.mxu0
        %v532 = vadd.f32 %v322, %v531
        %533 = vmatprep.mubr.f32.mxu0 0.0
        %534 = vmatmul.mubr.f32.gmra.mxu0 %v273
        %v535 = vpop.f32.mrf.mxu0
        %v536 = vadd.f32 %v318, %v535
        %v537 = vpop.f32.mrf.mxu0
        %v538 = vadd.f32 %v322, %v537
        %539 = vmatprep.mubr.f32.mxu0 0.0
        %540 = vmatmul.mubr.f32.gmra.mxu0 %v274
        %v541 = vpop.f32.mrf.mxu0
        %v542 = vadd.f32 %v318, %v541
        %v543 = vpop.f32.mrf.mxu0
        %v544 = vadd.f32 %v322, %v543
        %545 = vmatprep.mubr.f32.mxu0 0.0
        %546 = vmatmul.mubr.f32.gmra.mxu0 %v275
        %v547 = vpop.f32.mrf.mxu0
        %v548 = vadd.f32 %v318, %v547
        %v549 = vpop.f32.mrf.mxu0
        %v550 = vadd.f32 %v322, %v549
        %551 = vmatprep.mubr.f32.mxu0 0.0
        %552 = vmatmul.mubr.f32.gmra.mxu0 %v276
        %v553 = vpop.f32.mrf.mxu0
        %v554 = vadd.f32 %v318, %v553
        %v555 = vpop.f32.mrf.mxu0
        %v556 = vadd.f32 %v322, %v555
        %557 = vmatprep.mubr.f32.mxu0 0.0
        %558 = vmatmul.mubr.f32.gmra.mxu0 %v277
        %v559 = vpop.f32.mrf.mxu0
        %v560 = vadd.f32 %v318, %v559
        %v561 = vpop.f32.mrf.mxu0
        %v562 = vadd.f32 %v322, %v561
        %563 = vmatprep.mubr.f32.mxu0 0.0
        %564 = vmatmul.mubr.f32.gmra.mxu0 %v278
        %v565 = vpop.f32.mrf.mxu0
        %v566 = vadd.f32 %v318, %v565
        %v567 = vpop.f32.mrf.mxu0
        %v568 = vadd.f32 %v322, %v567
        %569 = vmatprep.mubr.f32.mxu0 0.0
        %570 = vmatmul.mubr.f32.gmra.mxu0 %v279
        %v571 = vpop.f32.mrf.mxu0
        %v572 = vadd.f32 %v318, %v571
        %v573 = vpop.f32.mrf.mxu0
        %v574 = vadd.f32 %v322, %v573
        %575 = vmatprep.mubr.f32.mxu0 0.0
        %576 = vmatmul.mubr.f32.gmra.mxu0 %v280
        %v577 = vpop.f32.mrf.mxu0
        %v578 = vadd.f32 %v318, %v577
        %v579 = vpop.f32.mrf.mxu0
        %v580 = vadd.f32 %v322, %v579
        %581 = vdwg.mxu0
        %582 = vst [vmem:[%s239] sm:$0xff] %v392
        %583 = vst [vmem:[%s239 + $0x8] sm:$0xff] %v394
        %584 = vst [vmem:[%s239 + $0x10] sm:$0xff] %v398
        %585 = vst [vmem:[%s239 + $0x18] sm:$0xff] %v400
        %586 = vst [vmem:[%s239 + $0x20] sm:$0xff] %v404
        %587 = vst [vmem:[%s239 + $0x28] sm:$0xff] %v406
        %588 = vst [vmem:[%s239 + $0x30] sm:$0xff] %v410
        %589 = vst [vmem:[%s239 + $0x38] sm:$0xff] %v412
        %590 = vst [vmem:[%s239 + $0x40] sm:$0xff] %v416
        %591 = vst [vmem:[%s239 + $0x48] sm:$0xff] %v418
        %592 = vst [vmem:[%s239 + $0x50] sm:$0xff] %v422
        %593 = vst [vmem:[%s239 + $0x58] sm:$0xff] %v424
        %594 = vst [vmem:[%s239 + $0x60] sm:$0xff] %v428
        %595 = vst [vmem:[%s239 + $0x68] sm:$0xff] %v430
        %596 = vst [vmem:[%s239 + $0x70] sm:$0xff] %v434
        %597 = vst [vmem:[%s239 + $0x78] sm:$0xff] %v436
        %598 = vst [vmem:[%s239 + $0x80] sm:$0xff] %v440
        %599 = vst [vmem:[%s239 + $0x88] sm:$0xff] %v442
        %600 = vst [vmem:[%s239 + $0x90] sm:$0xff] %v446
        %601 = vst [vmem:[%s239 + $0x98] sm:$0xff] %v448
        %602 = vst [vmem:[%s239 + $0xa0] sm:$0xff] %v452
        %603 = vst [vmem:[%s239 + $0xa8] sm:$0xff] %v454
        %604 = vst [vmem:[%s239 + $0xb0] sm:$0xff] %v458
        %605 = vst [vmem:[%s239 + $0xb8] sm:$0xff] %v460
        %606 = vst [vmem:[%s239 + $0xc0] sm:$0xff] %v464
        %607 = vst [vmem:[%s239 + $0xc8] sm:$0xff] %v466
        %608 = vst [vmem:[%s239 + $0xd0] sm:$0xff] %v470
        %609 = vst [vmem:[%s239 + $0xd8] sm:$0xff] %v472
        %610 = vst [vmem:[%s239 + $0xe0] sm:$0xff] %v476
        %611 = vst [vmem:[%s239 + $0xe8] sm:$0xff] %v478
        %612 = vst [vmem:[%s239 + $0xf0] sm:$0xff] %v482
        %613 = vst [vmem:[%s239 + $0xf8] sm:$0xff] %v484
        %614 = vst [vmem:[%s239 + $0x100] sm:$0xff] %v488
        %615 = vst [vmem:[%s239 + $0x108] sm:$0xff] %v490
        %616 = vst [vmem:[%s239 + $0x110] sm:$0xff] %v494
        %617 = vst [vmem:[%s239 + $0x118] sm:$0xff] %v496
        %618 = vst [vmem:[%s239 + $0x120] sm:$0xff] %v500
        %619 = vst [vmem:[%s239 + $0x128] sm:$0xff] %v502
        %620 = vst [vmem:[%s239 + $0x130] sm:$0xff] %v506
        %621 = vst [vmem:[%s239 + $0x138] sm:$0xff] %v508
        %622 = vst [vmem:[%s239 + $0x140] sm:$0xff] %v512
        %623 = vst [vmem:[%s239 + $0x148] sm:$0xff] %v514
        %624 = vst [vmem:[%s239 + $0x150] sm:$0xff] %v518
        %625 = vst [vmem:[%s239 + $0x158] sm:$0xff] %v520
        %626 = vst [vmem:[%s239 + $0x160] sm:$0xff] %v524
        %627 = vst [vmem:[%s239 + $0x168] sm:$0xff] %v526
        %628 = vst [vmem:[%s239 + $0x170] sm:$0xff] %v530
        %629 = vst [vmem:[%s239 + $0x178] sm:$0xff] %v532
        %630 = vst [vmem:[%s239 + $0x180] sm:$0xff] %v536
        %631 = vst [vmem:[%s239 + $0x188] sm:$0xff] %v538
        %632 = vst [vmem:[%s239 + $0x190] sm:$0xff] %v542
        %633 = vst [vmem:[%s239 + $0x198] sm:$0xff] %v544
        %634 = vst [vmem:[%s239 + $0x1a0] sm:$0xff] %v548
        %635 = vst [vmem:[%s239 + $0x1a8] sm:$0xff] %v550
        %636 = vst [vmem:[%s239 + $0x1b0] sm:$0xff] %v554
        %637 = vst [vmem:[%s239 + $0x1b8] sm:$0xff] %v556
        %638 = vst [vmem:[%s239 + $0x1c0] sm:$0xff] %v560
        %639 = vst [vmem:[%s239 + $0x1c8] sm:$0xff] %v562
        %640 = vst [vmem:[%s239 + $0x1d0] sm:$0xff] %v566
        %641 = vst [vmem:[%s239 + $0x1d8] sm:$0xff] %v568
        %642 = vst [vmem:[%s239 + $0x1e0] sm:$0xff] %v572
        %643 = vst [vmem:[%s239 + $0x1e8] sm:$0xff] %v574
        %644 = vst [vmem:[%s239 + $0x1f0] sm:$0xff] %v578
        %645 = vst [vmem:[%s239 + $0x1f8] sm:$0xff] %v580
        %s646 = sand.u32 %s121, 1
        %s647 = scalar_lea.sflag [#allocation4], %s646
        %s648 = sand.u32 %s121, 1
        %s649 = smul.addr %s648, 512
        %s650 = scalar_lea.vmem [#allocation7], %s649
        // Predicated region
        $region41: #{tpu_custom_call.1} parent=31 // pred_check
          %p651 = pneg %p131
        $region42: #{tpu_custom_call.1} parent=31 // pred_check_branch
          %653 = sbr.rel (%p651) target = $region44
        $region43: #{tpu_custom_call.1} parent=31 // pred_region
          %s654 = smul.u32 32, %s26
          %s655 = smul.u32 2, %s25
          %s657 = ssub.s32 8192, 8192
          %658 = vsyncadd %s647, %s657
          %s659 = smul.addr %s654, 2
          %s660 = sadd.s32 %s655, %s659
          %s661 = smul.addr %s660, 128
          %s662 = scalar_lea.hbm %s3, %s661
          %s663 = sshll.u32 %s650, 4
          %s664 = int_to_ptr.vmem [resolvable:$true] %s663
          %669 = dma.vmem_to_hbm [thread:$0]  %s664, 8192, %s662, %s647, 256, 256, 16
        $region44: #{tpu_custom_call.1} parent=31 // pred_fallthru
          _
      $region32: #{tpu_custom_call.1} parent=5 // pred_fallthru
        _
      %p670 = scmp.le.s32.totalorder 2, %s16
      // Predicated region
      $region45: #{tpu_custom_call.1} parent=5 // pred_check
        %p671 = pneg %p670
      $region46: #{tpu_custom_call.1} parent=5 // pred_check_branch
        %673 = sbr.rel (%p671) target = $region48
      $region47: #{tpu_custom_call.1} parent=5 // pred_region
        %s674 = ssub.s32 %s16, 2
        // Predicated region
        $region49: #{tpu_custom_call.1} parent=47 // pred_check
          %p675 = pneg %p137
        $region50: #{tpu_custom_call.1} parent=47 // pred_check_branch
          %677 = sbr.rel (%p675) target = $region52
        $region51: #{tpu_custom_call.1} parent=47 // pred_region
          %s678 = sand.u32 %s122, 1
          %s679 = scalar_lea.sflag [#allocation4], %s678
          %s680 = sand.u32 %s122, 1
          %s681 = smul.addr %s680, 512
          %s682 = scalar_lea.vmem [#allocation7], %s681
          %683 = dma.done %s679, 8192
        $region52: #{tpu_custom_call.1} parent=47 // pred_fallthru
          _
      $region48: #{tpu_custom_call.1} parent=5 // pred_fallthru
        _
    $region6: #{tpu_custom_call.1} parent=1 // loop_footer
      %s20 = sadd.s32 1, %s16
    $region7: #{tpu_custom_call.1} parent=1 // loop_footer_branch
      %15 = sbr.rel target = $region3
    $region8: #{tpu_custom_call.1} parent=1 // loop_exit
      _
    %684 = vsyncpa [#allocation3], 1
    %s685 = scalar_lea.sflag [#allocation3], 1
    %686 = vsyncpa %s685, 1
    %687 = vsyncpa [#allocation6], 1
    %688 = vsyncpa [#allocation4], 1
    %s689 = scalar_lea.sflag [#allocation4], 1
    %690 = vsyncpa %s689, 1

</llo_original>
